<compile_context>
chip_gen: v5e
topology: v5e:2x2
jax: 0.10.0
libtpu: 0.0.40
codegen_flags: <defaults>
</compile_context>

<pallas_src>
import functools

import jax
import jax.numpy as jnp
from jax.experimental import pallas as pl
from jax.experimental.pallas import tpu as pltpu


def _proto_dist_kernel(x_ref, p_ref, psq_ref, o_ref, *, squarred, ph_delta,
                       matmul_dtype):
    """One (batch, spatial-tile) grid step.

    x_ref:   (D, T)   embeddings tile, channels-major (NCHW-native)
    p_ref:   (P, D)   full prototype matrix (constant block, resident)
    psq_ref: (P, 1)   precomputed ||p||^2 (constant block, resident)
    o_ref:   (P, T)   -distance output tile (lane-dense: T % 128 == 0)
    """
    x = x_ref[...]
    p = p_ref[...]

    # Norm terms in f32 (keep precision / avoid extra cancellation).
    x_f32 = x.astype(jnp.float32)
    x_sq = jnp.sum(x_f32 * x_f32, axis=0, keepdims=True)        # (1, T)
    p_sq = psq_ref[...].astype(jnp.float32)                     # (P, 1)

    # Cross term on the MXU: (P, D) @ (D, T) -> (P, T), f32 accumulation.
    xp = jnp.dot(p.astype(matmul_dtype), x.astype(matmul_dtype),
                 preferred_element_type=jnp.float32)

    # ||x - p||^2 = ||x||^2 + ||p||^2 - 2 x.p  (clamped against cancellation)
    d2 = jnp.maximum(p_sq + x_sq - 2.0 * xp, 0.0)

    if ph_delta is not None:
        # Pseudo-Huber evaluated directly from d^2 (skips the first sqrt):
        #   delta * (sqrt((d/delta)^2 + 1) - 1) == delta * (sqrt(d2/delta^2 + 1) - 1)
        inv_delta_sq = 1.0 / (ph_delta * ph_delta)
        out = ph_delta * (jnp.sqrt(d2 * inv_delta_sq + 1.0) - 1.0)
        if squarred:
            out = out * out
    elif squarred:
        out = d2                       # skip sqrt-then-square entirely
    else:
        out = jnp.sqrt(d2)             # torch.norm(..., dim=-1)

    o_ref[...] = (-out).astype(o_ref.dtype)


def _round_up(x, m):
    return ((x + m - 1) // m) * m


def learnt_prototypes_forward(embeddings, prototypes, *, squarred=False,
                              ph=None, tile_hw=512,
                              matmul_dtype=jnp.float32):
    """Pallas implementation of LearntPrototypes.forward (euclidean dist).

    embeddings: (b, c, h, w) NCHW   or   (n, c)
    prototypes: (n_prototypes, c)
    returns:    (b, n_prototypes, h, w)   or   (n, 1, n_prototypes)
    """
    n_prototypes, embedding_dim = prototypes.shape

    two_dim_data = embeddings.ndim == 4
    if two_dim_data:
        b, c, h, w = embeddings.shape
        assert c == embedding_dim
        flat = embeddings.reshape(b, c, h * w)      # free reshape, NO transpose
    else:
        n, c = embeddings.shape
        assert c == embedding_dim
        # Non-image path (rare / small): present rows as a single "spatial" axis.
        flat = embeddings.T.reshape(1, c, n)
        b = 1

    hw = flat.shape[-1]

    # Lane-dense spatial tile (multiple of 128), clamped to the padded extent.
    tile = max(128, min(_round_up(tile_hw, 128), _round_up(hw, 128)))
    hw_pad = _round_up(hw, tile)
    if hw_pad != hw:
        flat = jnp.pad(flat, ((0, 0), (0, 0), (0, hw_pad - hw)))

    # Hoisted prototype norm: computed once here (plain JAX, tiny), then resident
    # in VMEM for every grid step instead of being re-reduced per tile.
    p_f32 = prototypes.astype(jnp.float32)
    p_sq = jnp.sum(p_f32 * p_f32, axis=-1, keepdims=True)       # (P, 1)

    kernel = functools.partial(_proto_dist_kernel, squarred=squarred,
                               ph_delta=ph, matmul_dtype=matmul_dtype)

    n_rows_total = b * hw_pad
    n_sqrt = 0 if (squarred and ph is None) else n_rows_total * n_prototypes
    cost = pl.CostEstimate(
        flops=2 * n_rows_total * n_prototypes * embedding_dim,
        transcendentals=n_sqrt,
        bytes_accessed=(flat.size * flat.dtype.itemsize
                        + prototypes.size * prototypes.dtype.itemsize
                        + n_rows_total * n_prototypes * 4),
    )

    neg_dists = pl.pallas_call(
        kernel,
        out_shape=jax.ShapeDtypeStruct((b, n_prototypes, hw_pad), jnp.float32),
        grid_spec=pltpu.PrefetchScalarGridSpec(
            num_scalar_prefetch=0,
            grid=(b, hw_pad // tile),
            in_specs=[
                pl.BlockSpec((None, embedding_dim, tile),
                             lambda bi, ti: (bi, 0, ti)),
                pl.BlockSpec((n_prototypes, embedding_dim),
                             lambda bi, ti: (0, 0)),
                pl.BlockSpec((n_prototypes, 1), lambda bi, ti: (0, 0)),
            ],
            out_specs=pl.BlockSpec((None, n_prototypes, tile),
                                   lambda bi, ti: (bi, 0, ti)),
        ),
        compiler_params=pltpu.CompilerParams(
            dimension_semantics=("parallel", "parallel"),
            vmem_limit_bytes=64 * 1024 * 1024),
        cost_estimate=cost,
    )(flat, prototypes, p_sq)

    neg_dists = neg_dists[:, :, :hw]

    if two_dim_data:
        # (b, P, h*w) -> (b, P, h, w): no transpose needed in this layout.
        return neg_dists.reshape(b, n_prototypes, h, w)
    # (1, P, n) -> (n, 1, P)
    return jnp.transpose(neg_dists, (2, 0, 1))


def _reference_forward(embeddings, prototypes, *, squarred=False, ph=None):
    """Pure-JAX mirror of the PyTorch forward (euclidean)."""
    two_dim_data = embeddings.ndim == 4
    if two_dim_data:
        b, c, h, w = embeddings.shape
        flat = jnp.transpose(embeddings.reshape(b, c, h * w), (0, 2, 1)).reshape(
            b * h * w, c)
    else:
        flat = embeddings
    diff = flat[:, None, :] - prototypes[None, :, :]
    dists = jnp.sqrt(jnp.sum(diff * diff, axis=-1))
    if ph is not None:
        dists = ph * (jnp.sqrt((dists / ph) ** 2 + 1.0) - 1.0)
    if squarred:
        dists = dists ** 2
    if two_dim_data:
        dists = jnp.transpose(dists.reshape(b, h * w, prototypes.shape[0]),
                              (0, 2, 1)).reshape(b, prototypes.shape[0], h, w)
    else:
        dists = dists.reshape(dists.shape[0], 1, dists.shape[-1])
    return -dists


if __name__ == "__main__":
    # Module config (synthetic, deterministic init mirroring
    # torch.rand((n_prototypes, embedding_dim)) i.e. uniform [0, 1)).
    n_prototypes = 16
    embedding_dim = 32
    b, h, w = 2, 16, 16

    key = jax.random.PRNGKey(0)
    k_proto, k_emb, k_emb2 = jax.random.split(key, 3)
    prototypes = jax.random.uniform(
        k_proto, (n_prototypes, embedding_dim), dtype=jnp.float32)
    x = jax.random.normal(k_emb, (b, embedding_dim, h, w), dtype=jnp.float32)

    # 1) default euclidean path (f32 operands)
    out = jax.block_until_ready(learnt_prototypes_forward(x, prototypes))
    ref = _reference_forward(x, prototypes)
    assert out.shape == (b, n_prototypes, h, w), out.shape
    assert jnp.allclose(out, ref, atol=1e-4, rtol=1e-4), (
        float(jnp.max(jnp.abs(out - ref))))

    # 2) Pseudo-Huber + squarred epilogues
    out_ph = jax.block_until_ready(
        learnt_prototypes_forward(x, prototypes, ph=1.0, squarred=True))
    ref_ph = _reference_forward(x, prototypes, ph=1.0, squarred=True)
    assert jnp.allclose(out_ph, ref_ph, atol=1e-4, rtol=1e-4), (
        float(jnp.max(jnp.abs(out_ph - ref_ph))))

    # 3) bf16 MXU-operand path (v6e/v7x peak); looser tolerance by design.
    out_bf = jax.block_until_ready(
        learnt_prototypes_forward(x, prototypes, matmul_dtype=jnp.bfloat16))
    assert jnp.allclose(out_bf, ref, atol=5e-2, rtol=5e-2), (
        float(jnp.max(jnp.abs(out_bf - ref))))

    # 4) non-image (n, c) input path
    x2d = jax.random.normal(k_emb2, (64, embedding_dim), dtype=jnp.float32)
    out2d = jax.block_until_ready(learnt_prototypes_forward(x2d, prototypes))
    ref2d = _reference_forward(x2d, prototypes)
    assert out2d.shape == (64, 1, n_prototypes), out2d.shape
    assert jnp.allclose(out2d, ref2d, atol=1e-4, rtol=1e-4), (
        float(jnp.max(jnp.abs(out2d - ref2d))))

    print("KERNEL_OK")
</pallas_src>

<mosaic_0001>
module attributes {stable_mosaic.version = 11 : i64} {
  func.func @_proto_dist_kernel(%arg0: i32, %arg1: i32, %arg2: memref<1x32x256xf32, #tpu.memory_space<vmem>>, %arg3: memref<16x32xf32, #tpu.memory_space<vmem>>, %arg4: memref<16x1xf32, #tpu.memory_space<vmem>>, %arg5: memref<1x16x256xf32, #tpu.memory_space<vmem>>) attributes {dimension_semantics = [#tpu.dimension_semantics<parallel>, #tpu.dimension_semantics<parallel>], iteration_bounds = array<i64: 2, 1>, scalar_prefetch = 0 : i64, scratch_operands = 0 : i64, tpu.core_type = #tpu.core_type<tc>, window_params = [{transform_indices = @transform_0, window_bounds = array<i64: 1, 32, 256>}, {pipeline_mode = #tpu.pipeline_mode<synchronous>, transform_indices = @transform_1, window_bounds = array<i64: 16, 32>}, {pipeline_mode = #tpu.pipeline_mode<synchronous>, transform_indices = @transform_2, window_bounds = array<i64: 16, 1>}, {transform_indices = @transform_3, window_bounds = array<i64: 1, 16, 256>}]} {
    %c0 = arith.constant 0 : index
    %c0_0 = arith.constant 0 : index
    %c0_1 = arith.constant 0 : index
    %0 = vector.load %arg2[%c0, %c0_0, %c0_1] : memref<1x32x256xf32, #tpu.memory_space<vmem>>, vector<1x32x256xf32>
    %1 = vector.shape_cast %0 : vector<1x32x256xf32> to vector<32x256xf32>
    %c0_2 = arith.constant 0 : index
    %c0_3 = arith.constant 0 : index
    %2 = vector.load %arg3[%c0_2, %c0_3] : memref<16x32xf32, #tpu.memory_space<vmem>>, vector<16x32xf32>
    %3 = arith.mulf %1, %1 : vector<32x256xf32>
    %cst = arith.constant dense<0.000000e+00> : vector<256xf32>
    %4 = vector.multi_reduction <add>, %3, %cst [0] : vector<32x256xf32> to vector<256xf32>
    %5 = vector.shape_cast %4 : vector<256xf32> to vector<1x256xf32>
    %c0_4 = arith.constant 0 : index
    %c0_5 = arith.constant 0 : index
    %6 = vector.load %arg4[%c0_4, %c0_5] : memref<16x1xf32, #tpu.memory_space<vmem>>, vector<16x1xf32>
    %cst_6 = arith.constant dense<0.000000e+00> : vector<16x256xf32>
    %7 = tpu.matmul %2, %1, %cst_6 {dimension_numbers = #tpu.dot_dimension_numbers<[1], [0], [0], [1], [0, 0, 1, 1], [], []>} : vector<16x32xf32>, vector<32x256xf32>, vector<16x256xf32> -> vector<16x256xf32>
    %8 = vector.broadcast %6 : vector<16x1xf32> to vector<16x256xf32>
    %9 = vector.broadcast %5 : vector<1x256xf32> to vector<16x256xf32>
    %10 = arith.addf %8, %9 : vector<16x256xf32>
    %cst_7 = arith.constant 2.000000e+00 : f32
    %11 = vector.broadcast %cst_7 : f32 to vector<16x256xf32>
    %12 = arith.mulf %11, %7 : vector<16x256xf32>
    %13 = arith.subf %10, %12 : vector<16x256xf32>
    %cst_8 = arith.constant 0.000000e+00 : f32
    %14 = vector.broadcast %cst_8 : f32 to vector<16x256xf32>
    %15 = arith.maximumf %13, %14 : vector<16x256xf32>
    %16 = math.sqrt %15 : vector<16x256xf32>
    %cst_9 = arith.constant 0.000000e+00 : f32
    %17 = vector.broadcast %cst_9 : f32 to vector<16x256xf32>
    %18 = arith.subf %17, %16 : vector<16x256xf32>
    %c0_10 = arith.constant 0 : index
    %c0_11 = arith.constant 0 : index
    %c0_12 = arith.constant 0 : index
    %19 = vector.load %arg5[%c0_10, %c0_11, %c0_12] : memref<1x16x256xf32, #tpu.memory_space<vmem>>, vector<1x16x256xf32>
    %20 = vector.shape_cast %19 : vector<1x16x256xf32> to vector<16x256xf32>
    %21 = vector.shape_cast %18 : vector<16x256xf32> to vector<1x16x256xf32>
    tpu.vector_store %arg5[%c0_10, %c0_11, %c0_12], %21 {strides = array<i32>} : memref<1x16x256xf32, #tpu.memory_space<vmem>>, vector<1x16x256xf32>,
    return
  }
  func.func @transform_0(%arg0: i32, %arg1: i32) -> (i32, i32, i32) {
    %c0_i32 = arith.constant 0 : i32
    %c0_i32_0 = arith.constant 0 : i32
    return %arg0, %c0_i32, %arg1 : i32, i32, i32
  }
  func.func @transform_1(%arg0: i32, %arg1: i32) -> (i32, i32) {
    %c0_i32 = arith.constant 0 : i32
    %c0_i32_0 = arith.constant 0 : i32
    %c0_i32_1 = arith.constant 0 : i32
    return %c0_i32, %c0_i32_0 : i32, i32
  }
  func.func @transform_2(%arg0: i32, %arg1: i32) -> (i32, i32) {
    %c0_i32 = arith.constant 0 : i32
    %c0_i32_0 = arith.constant 0 : i32
    %c0_i32_1 = arith.constant 0 : i32
    return %c0_i32, %c0_i32_0 : i32, i32
  }
  func.func @transform_3(%arg0: i32, %arg1: i32) -> (i32, i32, i32) {
    %c0_i32 = arith.constant 0 : i32
    %c0_i32_0 = arith.constant 0 : i32
    return %arg0, %c0_i32, %arg1 : i32, i32, i32
  }
}

</mosaic_0001>

<llo_original>
// kernel: tpu_custom_call.1
$region0: #{tpu_custom_call.1}
  #allocation0 [shape = 'u32[]', space=smem, size = 0x4, offset = 0x4, fixed_abs, tag = 'smem constant byte address 0x4 - core index']
  #allocation1 [shape = 'u32[72,128]{1,0:T(1,128)}', space=vmem, size = 0x9000, scoped, tag = 'internal scratch']
  %s0 = inlined_call_operand.hbm [shape: f32[2,32,256], index: 0, kind: input, shape index: {}]
  %s1 = inlined_call_operand.vmem [shape: f32[16,32], index: 1, kind: input, shape index: {}]
  %s2 = inlined_call_operand.vmem [shape: f32[16,1], index: 2, kind: input, shape index: {}]
  %s3 = inlined_call_operand.hbm [shape: f32[2,16,256], index: 3, kind: output, shape index: {}]
  %s4 = sld [smem:[#allocation0]]
  $region49: #{tpu_custom_call.1} parent=0
    _
  %s6 = ssub.s32 1, %s4
  %s7 = scalar_select 0, %s6, %s4
  $region1: #{tpu_custom_call.1} parent=0
    #allocation2 [shape = 'u8[65536]{0}', space=vmem, size = 0x10000, scoped, tag = 'input window, operand 0']
    #allocation3 [shape = 's32[2]{0}', space=sflag, size = 0x8, scoped, tag = 'scoped memory for tpu_custom_call.1']
    #allocation4 [shape = 's32[2]{0}', space=sflag, size = 0x8, scoped, tag = 'scoped memory for tpu_custom_call.1']
    #allocation5 [shape = 'u8[32768]{0}', space=vmem, size = 0x8000, scoped, tag = 'output window, operand 0']
    %8 = vsyncpa [#allocation3], 0
    %s9 = scalar_lea.sflag [#allocation3], 1
    %10 = vsyncpa %s9, 0
    %11 = vsyncpa [#allocation4], 0
    %s12 = scalar_lea.sflag [#allocation4], 1
    %13 = vsyncpa %s12, 0
    loop: start=0, step=1, limit=4
    $region2: #{tpu_custom_call.1} parent=1 // loop_pre_header
      _
    $region3: #{tpu_custom_call.1} parent=1 // loop_header
      %s15 = sphi 0, %s19
      %p16 = scmp.ge.s32.totalorder %s15, 4
      %s22 = sphi 0, %s34
      %s23 = sphi 0, %s30
      %s24 = sphi 0, %s22
      %s25 = sphi 0, %s23
      %s26 = sphi 0, %s24
      %s27 = sphi 0, %s25
      %s39 = sphi 0, %s41
      %s42 = sphi 0, %s39
      %s43 = sphi 0, %s42
      %s59 = sphi 0, %s43
      %s63 = sphi 0, %s63
      %s65 = sphi 0, %s63
      %s66 = sphi 0, %s65
      %s80 = sphi 0, %s66
      %s84 = sphi 0, %s84
      %s86 = sphi 0, %s84
      %s87 = sphi 0, %s86
      %s101 = sphi 0, %s87
      %s109 = sphi 0, %s111
      %s112 = sphi 0, %s109
      %s113 = sphi 0, %s112
      %s129 = sphi 0, %s113
    $region4: #{tpu_custom_call.1} parent=1 // loop_header_branch
      %18 = sbr.rel (%p16) target = $region8
    $region5: #{tpu_custom_call.1} parent=1 // loop_body
      %s20 = ssub.s32 %s15, 1
      %s21 = ssub.s32 %s15, 2
      %s28 = sadd.s32 1, %s23
      %p29 = scmp.ge.s32.totalorder %s28, 1
      %s30 = scalar_select %p29, 0, %s28
      %s31 = sadd.s32 1, %s22
      %s32 = scalar_select %p29, %s31, %s22
      %p33 = scmp.ge.s32.totalorder %s32, 2
      %s34 = scalar_select %p33, 0, %s32
      %s35 = ssub.s32 %s22, %s34
      %s36 = ssub.s32 %s23, %s30
      %s37 = sor.u32 %s35, %s36
      %p38 = scmp.eq.s32.totalorder %s37, 0
      %s40 = sadd.s32 %s39, 1
      %s41 = scalar_select %p38, %s39, %s40
      %p44 = pneg %p38
      %p45 = scmp.eq.s32.totalorder %s15, 1
      %p46 = por %p44, %p45
      %p47 = scmp.ne.s32.totalorder %s39, %s42
      %p48 = scmp.eq.s32.totalorder %s15, 0
      %p49 = por %p47, %p48
      %p50 = scmp.ne.s32.totalorder %s39, %s42
      %p51 = scmp.eq.s32.totalorder %s20, 1
      %p52 = por %p50, %p51
      %p53 = scmp.ne.s32.totalorder %s42, %s43
      %p54 = scmp.eq.s32.totalorder %s20, 0
      %p55 = por %p53, %p54
      %p56 = scmp.ne.s32.totalorder %s42, %s43
      %p57 = scmp.eq.s32.totalorder %s21, 1
      %p58 = por %p56, %p57
      %p60 = scmp.ne.s32.totalorder %s43, %s59
      %p61 = scmp.eq.s32.totalorder %s21, 0
      %p62 = por %p60, %p61
      %s64 = sadd.s32 %s63, 1
      %p67 = scmp.eq.s32.totalorder %s15, 1
      %p68 = scmp.ne.s32.totalorder %s63, %s65
      %p69 = scmp.eq.s32.totalorder %s15, 0
      %p70 = por %p68, %p69
      %p71 = scmp.ne.s32.totalorder %s63, %s65
      %p72 = scmp.eq.s32.totalorder %s20, 1
      %p73 = por %p71, %p72
      %p74 = scmp.ne.s32.totalorder %s65, %s66
      %p75 = scmp.eq.s32.totalorder %s20, 0
      %p76 = por %p74, %p75
      %p77 = scmp.ne.s32.totalorder %s65, %s66
      %p78 = scmp.eq.s32.totalorder %s21, 1
      %p79 = por %p77, %p78
      %p81 = scmp.ne.s32.totalorder %s66, %s80
      %p82 = scmp.eq.s32.totalorder %s21, 0
      %p83 = por %p81, %p82
      %s85 = sadd.s32 %s84, 1
      %p88 = scmp.eq.s32.totalorder %s15, 1
      %p89 = scmp.ne.s32.totalorder %s84, %s86
      %p90 = scmp.eq.s32.totalorder %s15, 0
      %p91 = por %p89, %p90
      %p92 = scmp.ne.s32.totalorder %s84, %s86
      %p93 = scmp.eq.s32.totalorder %s20, 1
      %p94 = por %p92, %p93
      %p95 = scmp.ne.s32.totalorder %s86, %s87
      %p96 = scmp.eq.s32.totalorder %s20, 0
      %p97 = por %p95, %p96
      %p98 = scmp.ne.s32.totalorder %s86, %s87
      %p99 = scmp.eq.s32.totalorder %s21, 1
      %p100 = por %p98, %p99
      %p102 = scmp.ne.s32.totalorder %s87, %s101
      %p103 = scmp.eq.s32.totalorder %s21, 0
      %p104 = por %p102, %p103
      %s105 = ssub.s32 %s22, %s34
      %s106 = ssub.s32 %s23, %s30
      %s107 = sor.u32 %s105, %s106
      %p108 = scmp.eq.s32.totalorder %s107, 0
      %s110 = sadd.s32 %s109, 1
      %s111 = scalar_select %p108, %s109, %s110
      %p114 = pneg %p108
      %p115 = scmp.eq.s32.totalorder %s15, 1
      %p116 = por %p114, %p115
      %p117 = scmp.ne.s32.totalorder %s109, %s112
      %p118 = scmp.eq.s32.totalorder %s15, 0
      %p119 = por %p117, %p118
      %p120 = scmp.ne.s32.totalorder %s109, %s112
      %p121 = scmp.eq.s32.totalorder %s20, 1
      %p122 = por %p120, %p121
      %p123 = scmp.ne.s32.totalorder %s112, %s113
      %p124 = scmp.eq.s32.totalorder %s20, 0
      %p125 = por %p123, %p124
      %p126 = scmp.ne.s32.totalorder %s112, %s113
      %p127 = scmp.eq.s32.totalorder %s21, 1
      %p128 = por %p126, %p127
      %p130 = scmp.ne.s32.totalorder %s113, %s129
      %p131 = scmp.eq.s32.totalorder %s21, 0
      %p132 = por %p130, %p131
      %p133 = scmp.le.s32.totalorder 1, %s15
      %p134 = scmp.lt.s32.totalorder %s15, 3
      %p135 = pnand %p133, %p134
      %p136 = pneg %p135
      // Predicated region
      $region9: #{tpu_custom_call.1} parent=5 // pred_check
        _
      $region10: #{tpu_custom_call.1} parent=5 // pred_check_branch
        %138 = sbr.rel (%p135) target = $region12
      $region11: #{tpu_custom_call.1} parent=5 // pred_region
        %s139 = ssub.s32 %s15, 1
        // Predicated region
        $region13: #{tpu_custom_call.1} parent=11 // pred_check
          %p140 = pneg %p76
        $region14: #{tpu_custom_call.1} parent=11 // pred_check_branch
          %142 = sbr.rel (%p140) target = $region16
        $region15: #{tpu_custom_call.1} parent=11 // pred_region
          _
        $region16: #{tpu_custom_call.1} parent=11 // pred_fallthru
          _
        // Predicated region
        $region17: #{tpu_custom_call.1} parent=11 // pred_check
          %p143 = pneg %p97
        $region18: #{tpu_custom_call.1} parent=11 // pred_check_branch
          %145 = sbr.rel (%p143) target = $region20
        $region19: #{tpu_custom_call.1} parent=11 // pred_region
          _
        $region20: #{tpu_custom_call.1} parent=11 // pred_fallthru
          _
      $region12: #{tpu_custom_call.1} parent=5 // pred_fallthru
        _
      %p146 = scmp.lt.s32.totalorder %s15, 2
      // Predicated region
      $region21: #{tpu_custom_call.1} parent=5 // pred_check
        %p147 = pneg %p146
      $region22: #{tpu_custom_call.1} parent=5 // pred_check_branch
        %149 = sbr.rel (%p147) target = $region24
      $region23: #{tpu_custom_call.1} parent=5 // pred_region
        // Predicated region
        $region25: #{tpu_custom_call.1} parent=23 // pred_check
          %p150 = pneg %p49
        $region26: #{tpu_custom_call.1} parent=23 // pred_check_branch
          %152 = sbr.rel (%p150) target = $region28
        $region27: #{tpu_custom_call.1} parent=23 // pred_region
          %s153 = sand.u32 %s39, 1
          %s154 = scalar_lea.sflag [#allocation3], %s153
          %s155 = sand.u32 %s39, 1
          %s156 = smul.addr %s155, 64
          %s157 = scalar_lea.vmem [#allocation2], %s156
          %s158 = smul.u32 2, %s23
          %160 = vsyncadd %s154, 0
          %s161 = smul.addr %s22, 8
          %s162 = sadd.s32 %s158, %s161
          %s163 = smul.addr %s162, 8
          %s164 = scalar_lea.hbm %s0, %s163
          %s165 = sshll.u32 %s164, 4
          %s166 = int_to_ptr.hbm [resolvable:$true] %s165
          %s167 = sshll.u32 %s157, 4
          %s168 = int_to_ptr.vmem [resolvable:$true] %s167
          %173 = dma.hbm_to_vmem [thread:$0]  %s166, 1024, %s168, %s154, 256, 256, 16
        $region28: #{tpu_custom_call.1} parent=23 // pred_fallthru
          _
      $region24: #{tpu_custom_call.1} parent=5 // pred_fallthru
        _
      %p174 = scmp.le.s32.totalorder 1, %s15
      %p175 = scmp.lt.s32.totalorder %s15, 3
      %p176 = pnand %p174, %p175
      %p177 = pneg %p176
      // Predicated region
      $region29: #{tpu_custom_call.1} parent=5 // pred_check
        _
      $region30: #{tpu_custom_call.1} parent=5 // pred_check_branch
        %179 = sbr.rel (%p176) target = $region32
      $region31: #{tpu_custom_call.1} parent=5 // pred_region
        %s180 = ssub.s32 %s15, 1
        %s181 = sand.u32 %s42, 1
        %s182 = scalar_lea.sflag [#allocation3], %s181
        %s183 = sand.u32 %s42, 1
        %s184 = smul.addr %s183, 64
        %s185 = scalar_lea.vmem [#allocation2], %s184
        // Predicated region
        $region33: #{tpu_custom_call.1} parent=31 // pred_check
          %p186 = pneg %p55
        $region34: #{tpu_custom_call.1} parent=31 // pred_check_branch
          %188 = sbr.rel (%p186) target = $region36
        $region35: #{tpu_custom_call.1} parent=31 // pred_region
          %190 = dma.done %s182, 1024
        $region36: #{tpu_custom_call.1} parent=31 // pred_fallthru
          _
        %s191 = sand.u32 %s42, 1
        %s192 = scalar_lea.sflag [#allocation3], %s191
        %s193 = sand.u32 %s42, 1
        %s194 = smul.addr %s193, 64
        %s195 = scalar_lea.vmem [#allocation2], %s194
        %p196 = pneg %p55
        %p197 = pneg %p52
        %p198 = pneg %p76
        %p199 = pneg %p73
        %p200 = pneg %p97
        %p201 = pneg %p94
        %p202 = pneg %p125
        %p203 = pneg %p122
        %s204 = sand.u32 %s112, 1
        %s205 = scalar_lea.sflag [#allocation4], %s204
        %s206 = sand.u32 %s112, 1
        %s207 = smul.addr %s206, 32
        %s208 = scalar_lea.vmem [#allocation5], %s207
        %s209 = smul.u32 2, %s25
        %s210 = smul.u32 2, %s25
        %v211 = vld [vmem:[%s185] sm:$0xff]
        %v212 = vld [vmem:[%s185 + $0x8] sm:$0xff]
        %v213 = vld [vmem:[%s185 + $0x10] sm:$0xff]
        %v214 = vld [vmem:[%s185 + $0x18] sm:$0xff]
        %v215 = vld [vmem:[%s185 + $0x20] sm:$0xff]
        %v216 = vld [vmem:[%s185 + $0x28] sm:$0xff]
        %v217 = vld [vmem:[%s185 + $0x30] sm:$0xff]
        %v218 = vld [vmem:[%s185 + $0x38] sm:$0xff]
        %v219 = vld [vmem:[%s1] sm:$0xff]
        %v220 = vld [vmem:[%s1 + $0x8] sm:$0xff]
        %v221 = vmul.f32 %v211, %v211
        %v222 = vmul.f32 %v212, %v212
        %v223 = vmul.f32 %v213, %v213
        %v224 = vmul.f32 %v214, %v214
        %v225 = vmul.f32 %v215, %v215
        %v226 = vmul.f32 %v216, %v216
        %v227 = vmul.f32 %v217, %v217
        %v228 = vmul.f32 %v218, %v218
        %v229 = vadd.f32 %v221, %v223
        %v230 = vadd.f32 %v229, %v225
        %v231 = vadd.f32 %v230, %v227
        %v232 = vrot.slane %v231, 4
        %v233 = vadd.f32 %v231, %v232
        %v234 = vrot.slane %v233, 2
        %v235 = vadd.f32 %v233, %v234
        %v236 = vrot.slane %v235, 1
        %v237 = vadd.f32 %v235, %v236
        %v238 = vadd.f32 %v222, %v224
        %v239 = vadd.f32 %v238, %v226
        %v240 = vadd.f32 %v239, %v228
        %v241 = vrot.slane %v240, 4
        %v242 = vadd.f32 %v240, %v241
        %v243 = vrot.slane %v242, 2
        %v244 = vadd.f32 %v242, %v243
        %v245 = vrot.slane %v244, 1
        %v246 = vadd.f32 %v244, %v245
        %v247 = vld [vmem:[%s2] sm:$0xff]
        %v248 = vld [vmem:[%s2 + $0x8] sm:$0xff]
        %vm249 = vcmask 261120
        %v251 = vsel %vm249, %v219, 0
        %v254 = vsel %vm249, %v220, 0
        %256 = vmatpush.msra.mxu0 0.0
        %257 = vmatpush.msra.mxu0 0.0
        %258 = vmatpush.msra.mxu0 0.0
        %259 = vmatpush.msra.mxu0 0.0
        %260 = vmatpush.msra.mxu0 0.0
        %261 = vmatpush.msra.mxu0 0.0
        %262 = vmatpush.msra.mxu0 0.0
        %263 = vmatpush.msra.mxu0 0.0
        %264 = vmatpush.msra.mxu0 0.0
        %265 = vmatpush.msra.mxu0 0.0
        %266 = vmatpush.msra.mxu0 0.0
        %267 = vmatpush.msra.mxu0 0.0
        %268 = vmatpush.msra.mxu0 %v217
        %269 = vmatpush.msra.mxu0 %v215
        %270 = vmatpush.msra.mxu0 %v213
        %271 = vmatpush.msra.mxu0 %v211
        %272 = vmatmul.f32.gmra.mxu0 %v251
        %v273 = vpop.f32.mrf.mxu0
        %v274 = vadd.f32 0.0, %v273
        %275 = vmatmul.f32.gmra.mxu0 %v254
        %v276 = vpop.f32.mrf.mxu0
        %v277 = vadd.f32 0.0, %v276
        %278 = vdwg.mxu0
        %279 = vmatpush.msra.mxu0 0.0
        %280 = vmatpush.msra.mxu0 0.0
        %281 = vmatpush.msra.mxu0 0.0
        %282 = vmatpush.msra.mxu0 0.0
        %283 = vmatpush.msra.mxu0 0.0
        %284 = vmatpush.msra.mxu0 0.0
        %285 = vmatpush.msra.mxu0 0.0
        %286 = vmatpush.msra.mxu0 0.0
        %287 = vmatpush.msra.mxu0 0.0
        %288 = vmatpush.msra.mxu0 0.0
        %289 = vmatpush.msra.mxu0 0.0
        %290 = vmatpush.msra.mxu0 0.0
        %291 = vmatpush.msra.mxu0 %v218
        %292 = vmatpush.msra.mxu0 %v216
        %293 = vmatpush.msra.mxu0 %v214
        %294 = vmatpush.msra.mxu0 %v212
        %295 = vmatmul.f32.gmra.mxu0 %v251
        %v296 = vpop.f32.mrf.mxu0
        %v297 = vadd.f32 0.0, %v296
        %298 = vmatmul.f32.gmra.mxu0 %v254
        %v299 = vpop.f32.mrf.mxu0
        %v300 = vadd.f32 0.0, %v299
        %301 = vdwg.mxu0
        %303 = vset.pattern.permute.xlu0 0
        %304 = vperm.xlu0 %303, %v247
        %v305 = vpop.permute.xlu0 %304
        %308 = vset.pattern.permute.xlu0 0
        %309 = vperm.xlu0 %308, %v248
        %v310 = vpop.permute.xlu0 %309
        %v312 = vadd.f32 %v305, %v237
        %v313 = vadd.f32 %v305, %v246
        %v314 = vadd.f32 %v310, %v237
        %v315 = vadd.f32 %v310, %v246
        %v316 = vmul.f32 %v274, 2.0
        %v317 = vmul.f32 %v297, 2.0
        %v318 = vmul.f32 %v277, 2.0
        %v319 = vmul.f32 %v300, 2.0
        %v320 = vsub.f32 %v312, %v316
        %v321 = vsub.f32 %v313, %v317
        %v322 = vsub.f32 %v314, %v318
        %v323 = vsub.f32 %v315, %v319
        %v324 = vmax.f32 %v320, 0.0
        %v325 = vmax.f32 %v321, 0.0
        %v326 = vmax.f32 %v322, 0.0
        %v327 = vmax.f32 %v323, 0.0
        %v328 = vrsqrt.pop %v324
        %v329 = vmul.f32 %v328, %v324
        %v330 = vmul.f32 %v329, %v328
        %v331 = vmul.f32 0.5, %v330
        %v332 = vsub.f32 1.5, %v331
        %v333 = vmul.f32 %v328, %v332
        %v334 = vmul.f32 %v324, %v333
        %vm335 = vcmp.eq.f32.partialorder %v324, inf
        %v336 = vsel %vm335, %v324, %v334
        %vm337 = vcmp.eq.f32.partialorder %v324, 0.0
        %v338 = vand.u32 %v324, 2147483648
        %v339 = vsel %vm337, %v338, %v336
        %v340 = vrsqrt.pop %v325
        %v341 = vmul.f32 %v340, %v325
        %v342 = vmul.f32 %v341, %v340
        %v343 = vmul.f32 0.5, %v342
        %v344 = vsub.f32 1.5, %v343
        %v345 = vmul.f32 %v340, %v344
        %v346 = vmul.f32 %v325, %v345
        %vm347 = vcmp.eq.f32.partialorder %v325, inf
        %v348 = vsel %vm347, %v325, %v346
        %vm349 = vcmp.eq.f32.partialorder %v325, 0.0
        %v350 = vand.u32 %v325, 2147483648
        %v351 = vsel %vm349, %v350, %v348
        %v352 = vrsqrt.pop %v326
        %v353 = vmul.f32 %v352, %v326
        %v354 = vmul.f32 %v353, %v352
        %v355 = vmul.f32 0.5, %v354
        %v356 = vsub.f32 1.5, %v355
        %v357 = vmul.f32 %v352, %v356
        %v358 = vmul.f32 %v326, %v357
        %vm359 = vcmp.eq.f32.partialorder %v326, inf
        %v360 = vsel %vm359, %v326, %v358
        %vm361 = vcmp.eq.f32.partialorder %v326, 0.0
        %v362 = vand.u32 %v326, 2147483648
        %v363 = vsel %vm361, %v362, %v360
        %v364 = vrsqrt.pop %v327
        %v365 = vmul.f32 %v364, %v327
        %v366 = vmul.f32 %v365, %v364
        %v367 = vmul.f32 0.5, %v366
        %v368 = vsub.f32 1.5, %v367
        %v369 = vmul.f32 %v364, %v368
        %v370 = vmul.f32 %v327, %v369
        %vm371 = vcmp.eq.f32.partialorder %v327, inf
        %v372 = vsel %vm371, %v327, %v370
        %vm373 = vcmp.eq.f32.partialorder %v327, 0.0
        %v374 = vand.u32 %v327, 2147483648
        %v375 = vsel %vm373, %v374, %v372
        %v376 = vsub.f32 0.0, %v339
        %v377 = vsub.f32 0.0, %v351
        %v378 = vsub.f32 0.0, %v363
        %v379 = vsub.f32 0.0, %v375
        %380 = vst [vmem:[%s208] sm:$0xff] %v376
        %381 = vst [vmem:[%s208 + $0x8] sm:$0xff] %v377
        %382 = vst [vmem:[%s208 + $0x10] sm:$0xff] %v378
        %383 = vst [vmem:[%s208 + $0x18] sm:$0xff] %v379
        %s384 = sand.u32 %s112, 1
        %s385 = scalar_lea.sflag [#allocation4], %s384
        %s386 = sand.u32 %s112, 1
        %s387 = smul.addr %s386, 32
        %s388 = scalar_lea.vmem [#allocation5], %s387
        // Predicated region
        $region37: #{tpu_custom_call.1} parent=31 // pred_check
          %p389 = pneg %p122
        $region38: #{tpu_custom_call.1} parent=31 // pred_check_branch
          %391 = sbr.rel (%p389) target = $region40
        $region39: #{tpu_custom_call.1} parent=31 // pred_region
          %s392 = smul.u32 2, %s25
          %394 = vsyncadd %s385, 0
          %s395 = smul.addr %s24, 4
          %s396 = sadd.s32 %s392, %s395
          %s397 = smul.addr %s396, 8
          %s398 = scalar_lea.hbm %s3, %s397
          %s399 = sshll.u32 %s388, 4
          %s400 = int_to_ptr.vmem [resolvable:$true] %s399
          %s401 = sshll.u32 %s398, 4
          %s402 = int_to_ptr.hbm [resolvable:$true] %s401
          %407 = dma.vmem_to_hbm [thread:$0]  %s400, 512, %s402, %s385, 256, 256, 16
        $region40: #{tpu_custom_call.1} parent=31 // pred_fallthru
          _
      $region32: #{tpu_custom_call.1} parent=5 // pred_fallthru
        _
      %p408 = scmp.le.s32.totalorder 2, %s15
      // Predicated region
      $region41: #{tpu_custom_call.1} parent=5 // pred_check
        %p409 = pneg %p408
      $region42: #{tpu_custom_call.1} parent=5 // pred_check_branch
        %411 = sbr.rel (%p409) target = $region44
      $region43: #{tpu_custom_call.1} parent=5 // pred_region
        %s412 = ssub.s32 %s15, 2
        // Predicated region
        $region45: #{tpu_custom_call.1} parent=43 // pred_check
          %p413 = pneg %p128
        $region46: #{tpu_custom_call.1} parent=43 // pred_check_branch
          %415 = sbr.rel (%p413) target = $region48
        $region47: #{tpu_custom_call.1} parent=43 // pred_region
          %s416 = sand.u32 %s113, 1
          %s417 = scalar_lea.sflag [#allocation4], %s416
          %s418 = sand.u32 %s113, 1
          %s419 = smul.addr %s418, 32
          %s420 = scalar_lea.vmem [#allocation5], %s419
          %422 = dma.done %s417, 512
        $region48: #{tpu_custom_call.1} parent=43 // pred_fallthru
          _
      $region44: #{tpu_custom_call.1} parent=5 // pred_fallthru
        _
    $region6: #{tpu_custom_call.1} parent=1 // loop_footer
      %s19 = sadd.s32 1, %s15
    $region7: #{tpu_custom_call.1} parent=1 // loop_footer_branch
      %14 = sbr.rel target = $region3
    $region8: #{tpu_custom_call.1} parent=1 // loop_exit
      _
    %423 = vsyncpa [#allocation3], 1
    %s424 = scalar_lea.sflag [#allocation3], 1
    %425 = vsyncpa %s424, 1
    %426 = vsyncpa [#allocation4], 1
    %s427 = scalar_lea.sflag [#allocation4], 1
    %428 = vsyncpa %s427, 1

</llo_original>
